<compile_context>
chip_gen: v6e
topology: v6e:2x2x1
jax: 0.10.0
libtpu: 0.0.40
codegen_flags: <defaults>
</compile_context>

<pallas_src>
import math

import jax
import jax.numpy as jnp
from jax.experimental import pallas as pl
from jax.experimental.pallas import tpu as pltpu

LANE = 128      # vreg lane width
SUBLANE = 8     # f32 sublane count


def _round_up(x, m):
    return ((x + m - 1) // m) * m


# ----------------------------------------------------------------------------
# Model definition (mirrors AeNet.__init__ logic)
# ----------------------------------------------------------------------------
def build_aenet_dims_and_acts(size, net_list):
    """Replicates AeNet.__init__: returns list of (in_dim, out_dim) and activations."""
    if len(net_list) % 2 == 0:
        raise UserWarning("net_list参数量必须为奇数")
    net_list = list(net_list) + [size]          # module appends `size`
    dims, acts = [], []
    pre = size
    n = len(net_list)
    for i, net_size in enumerate(net_list):
        dims.append((pre, net_size))
        if i == n - 1:
            acts.append("none")                  # final Linear, no activation
            break
        if i == n // 2 - 1:
            acts.append("sigmoid")               # bottleneck / key layer
        else:
            acts.append("tanh")
        pre = net_size
    return dims, tuple(acts)


def init_params(key, dims, dtype=jnp.float32):
    """Deterministic PyTorch-style Linear init: U(-1/sqrt(fan_in), 1/sqrt(fan_in)).
    Stored PyTorch-style as ([out, in] weight, [out] bias)."""
    weights, biases = [], []
    for (fan_in, fan_out) in dims:
        key, kw, kb = jax.random.split(key, 3)
        bound = 1.0 / math.sqrt(fan_in)
        w = jax.random.uniform(kw, (fan_out, fan_in), dtype, minval=-bound, maxval=bound)
        b = jax.random.uniform(kb, (fan_out,), dtype, minval=-bound, maxval=bound)
        weights.append(w)
        biases.append(b)
    return weights, biases


def pack_params(weights, biases, *, param_dtype=jnp.bfloat16):
    """ONE-TIME layout + dtype transform for the kernel.

    weight [out,in] -> [in_pad, out_pad], bias [out] -> [1, out_pad], in `param_dtype`
    (bf16 by default: native MXU operand dtype on v5e/v6e/v7x; accumulation in the
    kernel stays f32).  Padded rows/cols are zero, which neutralizes padded lanes of
    intermediate activations downstream.

    Layer 0's K dim is only rounded to the sublane count (8) so the un-padded input can
    be streamed straight from HBM; later layers' K dims are 128-aligned (they consume the
    previous layer's 128-padded output).
    """
    packed = []
    for li, (w, b) in enumerate(zip(weights, biases)):
        fan_out, fan_in = w.shape
        in_pad = _round_up(fan_in, SUBLANE) if li == 0 else _round_up(fan_in, LANE)
        out_pad = _round_up(fan_out, LANE)
        wt = (jnp.zeros((in_pad, out_pad), param_dtype)
              .at[:fan_in, :fan_out].set(w.T.astype(param_dtype)))
        bp = (jnp.zeros((1, out_pad), param_dtype)
              .at[0, :fan_out].set(b.astype(param_dtype)))
        packed.append((wt, bp))
    return packed


# ----------------------------------------------------------------------------
# Pallas kernel
# ----------------------------------------------------------------------------
def make_aenet_kernel(acts):
    """Kernel closes over the (static) activation schedule.

    Ref order: x_ref, (w0, b0, w1, b1, ...), out_ref
    where wi is [in_pad, out_pad] and bi is [1, out_pad] (dtype = packed param dtype).
    """
    def kernel(*refs):
        x_ref = refs[0]
        out_ref = refs[-1]
        param_refs = refs[1:-1]

        h = x_ref[...].astype(jnp.float32)
        for i, act in enumerate(acts):
            w_ref = param_refs[2 * i]                     # [in_pad, out_pad]
            b = param_refs[2 * i + 1][...].astype(jnp.float32)   # [1, out_pad] (tiny cast)
            # Cast only the activation to the weight's (pre-packed) dtype; weights are
            # already in MXU-native form.  Accumulate in f32.
            h = jnp.dot(h.astype(w_ref.dtype), w_ref[...],
                        preferred_element_type=jnp.float32)
            h = h + b
            if act == "tanh":
                h = jnp.tanh(h)
            elif act == "sigmoid":
                # sigmoid(x) = 0.5*(tanh(0.5*x)+1): 1 EUP op instead of exp + reciprocal.
                h = 0.5 * (jnp.tanh(0.5 * h) + 1.0)
            # "none": no activation
        out_ref[...] = h.astype(out_ref.dtype)

    return kernel


def _aenet_forward_pallas(x, packed_params, *, acts, out_dim, batch_tile=512):
    """Full AeNet forward in one pallas_call, batch-tiled grid, weights VMEM-resident."""
    batch, in_dim = x.shape
    in_k = packed_params[0][0].shape[0]          # layer-0 K dim (sublane-rounded in_dim)
    out_pad = packed_params[-1][0].shape[1]

    # --- batch tile selection -------------------------------------------------
    # Keep tiles large (amortize ~0.35 us/step grid overhead) but guarantee >=2 grid
    # steps whenever batch > 8 so ("parallel",) can shard across both v7x TensorCores.
    batch_pad = _round_up(batch, SUBLANE)
    if batch_pad <= SUBLANE:
        tb = batch_pad
    else:
        half = _round_up((batch_pad + 1) // 2, SUBLANE)
        tb = min(batch_tile, half)
        batch_pad = _round_up(batch, tb)

    # --- input: NO 128-lane HBM padding; only pad batch rows / sublane-round K if
    # strictly needed.  Last dim of the block equals the full array width -> legal.
    if batch_pad == batch and in_k == in_dim:
        x_p = x                                  # zero-copy: stream x as-is from HBM
    else:
        x_p = jnp.zeros((batch_pad, in_k), x.dtype).at[:batch, :in_dim].set(x)

    flat_params = [p for pair in packed_params for p in pair]

    in_specs = [pl.BlockSpec((tb, in_k), lambda i: (i, 0))]
    for w, b in packed_params:
        in_specs.append(pl.BlockSpec(w.shape, lambda i: (0, 0)))   # resident weight
        in_specs.append(pl.BlockSpec(b.shape, lambda i: (0, 0)))   # resident bias
    out_specs = pl.BlockSpec((tb, out_pad), lambda i: (i, 0))      # lane-dense store

    # --- VMEM budget: double-buffered resident params + double-buffered in/out tiles
    # + f32 intermediate slack.  Cap at 48 MiB (headroom under v7x's 64 MiB physical).
    param_bytes = sum(int(p.size) * p.dtype.itemsize for p in flat_params)
    widest = max(in_k, max(w.shape[1] for w, _ in packed_params))
    act_bytes = 2 * tb * (in_k + out_pad) * x.dtype.itemsize + 2 * tb * widest * 4
    vmem_limit = min(48 * 1024 * 1024,
                     max(16 * 1024 * 1024, 2 * param_bytes + act_bytes + (2 << 20)))

    kernel = make_aenet_kernel(acts)

    out_p = pl.pallas_call(
        kernel,
        out_shape=jax.ShapeDtypeStruct((batch_pad, out_pad), x.dtype),
        grid=(batch_pad // tb,),
        in_specs=in_specs,
        out_specs=out_specs,
        compiler_params=pltpu.CompilerParams(
            dimension_semantics=("parallel",),
            vmem_limit_bytes=vmem_limit,
        ),
    )(x_p, *flat_params)

    # Final logical slice (kernel store itself stays 128-wide / unmasked).
    return out_p[:batch, :out_dim]


aenet_forward_pallas = jax.jit(
    _aenet_forward_pallas,
    static_argnames=("acts", "out_dim", "batch_tile"),
)


# ----------------------------------------------------------------------------
# Pure-JAX reference (for correctness check) — uses the original PyTorch layout.
# ----------------------------------------------------------------------------
def aenet_forward_ref(x, weights, biases, acts):
    h = x
    for w, b, act in zip(weights, biases, acts):
        h = h @ w.T + b
        if act == "tanh":
            h = jnp.tanh(h)
        elif act == "sigmoid":
            h = jax.nn.sigmoid(h)
    return h


# ----------------------------------------------------------------------------
if __name__ == "__main__":
    size = 32
    net_list = [16, 8, 16]          # odd length, as required by AeNet
    batch = 8

    dims, acts = build_aenet_dims_and_acts(size, net_list)
    # dims: [(32,16),(16,8),(8,16),(16,32)]  acts: ('tanh','sigmoid','tanh','none')

    key = jax.random.PRNGKey(0)
    key, kx = jax.random.split(key)
    x = jax.random.normal(kx, (batch, size), jnp.float32)
    weights, biases = init_params(key, dims)

    ref = aenet_forward_ref(x, weights, biases, acts)

    # Default fast path: bf16 MXU operands (one-time pack), f32 accumulation/activations.
    packed_bf16 = pack_params(weights, biases, param_dtype=jnp.bfloat16)
    out_bf16 = aenet_forward_pallas(x, packed_bf16, acts=acts, out_dim=size)
    out_bf16 = jax.block_until_ready(out_bf16)
    assert out_bf16.shape == (batch, size), out_bf16.shape
    assert jnp.allclose(out_bf16, ref, atol=3e-2, rtol=3e-2), "bf16 path mismatch vs reference"

    # Exact-precision path: f32 operands, tight numerics check.
    packed_f32 = pack_params(weights, biases, param_dtype=jnp.float32)
    out_f32 = jax.block_until_ready(
        aenet_forward_pallas(x, packed_f32, acts=acts, out_dim=size))
    assert jnp.allclose(out_f32, ref, atol=1e-5, rtol=1e-5), "f32 path mismatch vs reference"

    print("KERNEL_OK")
</pallas_src>

<mosaic_0001>
module attributes {stable_mosaic.version = 11 : i64} {
  func.func @kernel(%arg0: i32, %arg1: memref<8x32xf32, #tpu.memory_space<vmem>>, %arg2: memref<32x128xbf16, #tpu.memory_space<vmem>>, %arg3: memref<1x128xbf16, #tpu.memory_space<vmem>>, %arg4: memref<128x128xbf16, #tpu.memory_space<vmem>>, %arg5: memref<1x128xbf16, #tpu.memory_space<vmem>>, %arg6: memref<128x128xbf16, #tpu.memory_space<vmem>>, %arg7: memref<1x128xbf16, #tpu.memory_space<vmem>>, %arg8: memref<128x128xbf16, #tpu.memory_space<vmem>>, %arg9: memref<1x128xbf16, #tpu.memory_space<vmem>>, %arg10: memref<8x128xf32, #tpu.memory_space<vmem>>) attributes {dimension_semantics = [#tpu.dimension_semantics<parallel>], iteration_bounds = array<i64: 1>, scalar_prefetch = 0 : i64, scratch_operands = 0 : i64, tpu.core_type = #tpu.core_type<tc>, window_params = [{transform_indices = @transform_0, window_bounds = array<i64: 8, 32>}, {pipeline_mode = #tpu.pipeline_mode<synchronous>, transform_indices = @transform_1, window_bounds = array<i64: 32, 128>}, {pipeline_mode = #tpu.pipeline_mode<synchronous>, transform_indices = @transform_2, window_bounds = array<i64: 1, 128>}, {pipeline_mode = #tpu.pipeline_mode<synchronous>, transform_indices = @transform_3, window_bounds = array<i64: 128, 128>}, {pipeline_mode = #tpu.pipeline_mode<synchronous>, transform_indices = @transform_4, window_bounds = array<i64: 1, 128>}, {pipeline_mode = #tpu.pipeline_mode<synchronous>, transform_indices = @transform_5, window_bounds = array<i64: 128, 128>}, {pipeline_mode = #tpu.pipeline_mode<synchronous>, transform_indices = @transform_6, window_bounds = array<i64: 1, 128>}, {pipeline_mode = #tpu.pipeline_mode<synchronous>, transform_indices = @transform_7, window_bounds = array<i64: 128, 128>}, {pipeline_mode = #tpu.pipeline_mode<synchronous>, transform_indices = @transform_8, window_bounds = array<i64: 1, 128>}, {transform_indices = @transform_9, window_bounds = array<i64: 8, 128>}]} {
    %c0 = arith.constant 0 : index
    %c0_0 = arith.constant 0 : index
    %0 = vector.load %arg1[%c0, %c0_0] : memref<8x32xf32, #tpu.memory_space<vmem>>, vector<8x32xf32>
    %c0_1 = arith.constant 0 : index
    %c0_2 = arith.constant 0 : index
    %1 = vector.load %arg3[%c0_1, %c0_2] : memref<1x128xbf16, #tpu.memory_space<vmem>>, vector<1x128xbf16>
    %2 = arith.extf %1 : vector<1x128xbf16> to vector<1x128xf32>
    %3 = arith.truncf %0 : vector<8x32xf32> to vector<8x32xbf16>
    %c0_3 = arith.constant 0 : index
    %c0_4 = arith.constant 0 : index
    %4 = vector.load %arg2[%c0_3, %c0_4] : memref<32x128xbf16, #tpu.memory_space<vmem>>, vector<32x128xbf16>
    %cst = arith.constant dense<0.000000e+00> : vector<8x128xf32>
    %5 = tpu.matmul %3, %4, %cst {dimension_numbers = #tpu.dot_dimension_numbers<[1], [0], [0], [1], [0, 0, 1, 1], [], []>} : vector<8x32xbf16>, vector<32x128xbf16>, vector<8x128xf32> -> vector<8x128xf32>
    %6 = vector.broadcast %2 : vector<1x128xf32> to vector<8x128xf32>
    %7 = arith.addf %5, %6 : vector<8x128xf32>
    %8 = math.tanh %7 : vector<8x128xf32>
    %c0_5 = arith.constant 0 : index
    %c0_6 = arith.constant 0 : index
    %9 = vector.load %arg5[%c0_5, %c0_6] : memref<1x128xbf16, #tpu.memory_space<vmem>>, vector<1x128xbf16>
    %10 = arith.extf %9 : vector<1x128xbf16> to vector<1x128xf32>
    %11 = arith.truncf %8 : vector<8x128xf32> to vector<8x128xbf16>
    %c0_7 = arith.constant 0 : index
    %c0_8 = arith.constant 0 : index
    %12 = vector.load %arg4[%c0_7, %c0_8] : memref<128x128xbf16, #tpu.memory_space<vmem>>, vector<128x128xbf16>
    %cst_9 = arith.constant dense<0.000000e+00> : vector<8x128xf32>
    %13 = tpu.matmul %11, %12, %cst_9 {dimension_numbers = #tpu.dot_dimension_numbers<[1], [0], [0], [1], [0, 0, 1, 1], [], []>} : vector<8x128xbf16>, vector<128x128xbf16>, vector<8x128xf32> -> vector<8x128xf32>
    %14 = vector.broadcast %10 : vector<1x128xf32> to vector<8x128xf32>
    %15 = arith.addf %13, %14 : vector<8x128xf32>
    %cst_10 = arith.constant 5.000000e-01 : f32
    %16 = vector.broadcast %cst_10 : f32 to vector<8x128xf32>
    %17 = arith.mulf %16, %15 : vector<8x128xf32>
    %18 = math.tanh %17 : vector<8x128xf32>
    %cst_11 = arith.constant 1.000000e+00 : f32
    %19 = vector.broadcast %cst_11 : f32 to vector<8x128xf32>
    %20 = arith.addf %18, %19 : vector<8x128xf32>
    %cst_12 = arith.constant 5.000000e-01 : f32
    %21 = vector.broadcast %cst_12 : f32 to vector<8x128xf32>
    %22 = arith.mulf %21, %20 : vector<8x128xf32>
    %c0_13 = arith.constant 0 : index
    %c0_14 = arith.constant 0 : index
    %23 = vector.load %arg7[%c0_13, %c0_14] : memref<1x128xbf16, #tpu.memory_space<vmem>>, vector<1x128xbf16>
    %24 = arith.extf %23 : vector<1x128xbf16> to vector<1x128xf32>
    %25 = arith.truncf %22 : vector<8x128xf32> to vector<8x128xbf16>
    %c0_15 = arith.constant 0 : index
    %c0_16 = arith.constant 0 : index
    %26 = vector.load %arg6[%c0_15, %c0_16] : memref<128x128xbf16, #tpu.memory_space<vmem>>, vector<128x128xbf16>
    %cst_17 = arith.constant dense<0.000000e+00> : vector<8x128xf32>
    %27 = tpu.matmul %25, %26, %cst_17 {dimension_numbers = #tpu.dot_dimension_numbers<[1], [0], [0], [1], [0, 0, 1, 1], [], []>} : vector<8x128xbf16>, vector<128x128xbf16>, vector<8x128xf32> -> vector<8x128xf32>
    %28 = vector.broadcast %24 : vector<1x128xf32> to vector<8x128xf32>
    %29 = arith.addf %27, %28 : vector<8x128xf32>
    %30 = math.tanh %29 : vector<8x128xf32>
    %c0_18 = arith.constant 0 : index
    %c0_19 = arith.constant 0 : index
    %31 = vector.load %arg9[%c0_18, %c0_19] : memref<1x128xbf16, #tpu.memory_space<vmem>>, vector<1x128xbf16>
    %32 = arith.extf %31 : vector<1x128xbf16> to vector<1x128xf32>
    %33 = arith.truncf %30 : vector<8x128xf32> to vector<8x128xbf16>
    %c0_20 = arith.constant 0 : index
    %c0_21 = arith.constant 0 : index
    %34 = vector.load %arg8[%c0_20, %c0_21] : memref<128x128xbf16, #tpu.memory_space<vmem>>, vector<128x128xbf16>
    %cst_22 = arith.constant dense<0.000000e+00> : vector<8x128xf32>
    %35 = tpu.matmul %33, %34, %cst_22 {dimension_numbers = #tpu.dot_dimension_numbers<[1], [0], [0], [1], [0, 0, 1, 1], [], []>} : vector<8x128xbf16>, vector<128x128xbf16>, vector<8x128xf32> -> vector<8x128xf32>
    %36 = vector.broadcast %32 : vector<1x128xf32> to vector<8x128xf32>
    %37 = arith.addf %35, %36 : vector<8x128xf32>
    %c0_23 = arith.constant 0 : index
    %c0_24 = arith.constant 0 : index
    %38 = vector.load %arg10[%c0_23, %c0_24] : memref<8x128xf32, #tpu.memory_space<vmem>>, vector<8x128xf32>
    tpu.vector_store %arg10[%c0_23, %c0_24], %37 {strides = array<i32>} : memref<8x128xf32, #tpu.memory_space<vmem>>, vector<8x128xf32>,
    return
  }
  func.func @transform_0(%arg0: i32) -> (i32, i32) {
    %c0_i32 = arith.constant 0 : i32
    %c0_i32_0 = arith.constant 0 : i32
    return %arg0, %c0_i32 : i32, i32
  }
  func.func @transform_1(%arg0: i32) -> (i32, i32) {
    %c0_i32 = arith.constant 0 : i32
    %c0_i32_0 = arith.constant 0 : i32
    %c0_i32_1 = arith.constant 0 : i32
    return %c0_i32, %c0_i32_0 : i32, i32
  }
  func.func @transform_2(%arg0: i32) -> (i32, i32) {
    %c0_i32 = arith.constant 0 : i32
    %c0_i32_0 = arith.constant 0 : i32
    %c0_i32_1 = arith.constant 0 : i32
    return %c0_i32, %c0_i32_0 : i32, i32
  }
  func.func @transform_3(%arg0: i32) -> (i32, i32) {
    %c0_i32 = arith.constant 0 : i32
    %c0_i32_0 = arith.constant 0 : i32
    %c0_i32_1 = arith.constant 0 : i32
    return %c0_i32, %c0_i32_0 : i32, i32
  }
  func.func @transform_4(%arg0: i32) -> (i32, i32) {
    %c0_i32 = arith.constant 0 : i32
    %c0_i32_0 = arith.constant 0 : i32
    %c0_i32_1 = arith.constant 0 : i32
    return %c0_i32, %c0_i32_0 : i32, i32
  }
  func.func @transform_5(%arg0: i32) -> (i32, i32) {
    %c0_i32 = arith.constant 0 : i32
    %c0_i32_0 = arith.constant 0 : i32
    %c0_i32_1 = arith.constant 0 : i32
    return %c0_i32, %c0_i32_0 : i32, i32
  }
  func.func @transform_6(%arg0: i32) -> (i32, i32) {
    %c0_i32 = arith.constant 0 : i32
    %c0_i32_0 = arith.constant 0 : i32
    %c0_i32_1 = arith.constant 0 : i32
    return %c0_i32, %c0_i32_0 : i32, i32
  }
  func.func @transform_7(%arg0: i32) -> (i32, i32) {
    %c0_i32 = arith.constant 0 : i32
    %c0_i32_0 = arith.constant 0 : i32
    %c0_i32_1 = arith.constant 0 : i32
    return %c0_i32, %c0_i32_0 : i32, i32
  }
  func.func @transform_8(%arg0: i32) -> (i32, i32) {
    %c0_i32 = arith.constant 0 : i32
    %c0_i32_0 = arith.constant 0 : i32
    %c0_i32_1 = arith.constant 0 : i32
    return %c0_i32, %c0_i32_0 : i32, i32
  }
  func.func @transform_9(%arg0: i32) -> (i32, i32) {
    %c0_i32 = arith.constant 0 : i32
    %c0_i32_0 = arith.constant 0 : i32
    return %arg0, %c0_i32 : i32, i32
  }
}

</mosaic_0001>

<llo_original>
// kernel: _aenet_forward_pallas.1
$region0: #{_aenet_forward_pallas.1}
  #allocation0 [shape = 'u32[]', space=smem, size = 0x4, offset = 0x4, fixed_abs, tag = 'smem constant byte address 0x4 - core index']
  #allocation1 [shape = 'u32[144,128]{1,0:T(1,128)}', space=vmem, size = 0x12000, scoped, tag = 'internal scratch']
  %s0 = inlined_call_operand.hbm [shape: f32[8,32], index: 0, kind: input, shape index: {}]
  %s1 = inlined_call_operand.hbm [shape: bf16[32,128], index: 1, kind: input, shape index: {}]
  %s2 = inlined_call_operand.vmem [shape: bf16[1,128], index: 2, kind: input, shape index: {}]
  %s3 = inlined_call_operand.hbm [shape: bf16[128,128], index: 3, kind: input, shape index: {}]
  %s4 = inlined_call_operand.vmem [shape: bf16[1,128], index: 4, kind: input, shape index: {}]
  %s5 = inlined_call_operand.hbm [shape: bf16[128,128], index: 5, kind: input, shape index: {}]
  %s6 = inlined_call_operand.vmem [shape: bf16[1,128], index: 6, kind: input, shape index: {}]
  %s7 = inlined_call_operand.hbm [shape: bf16[128,128], index: 7, kind: input, shape index: {}]
  %s8 = inlined_call_operand.vmem [shape: bf16[1,128], index: 8, kind: input, shape index: {}]
  %s9 = inlined_call_operand.hbm [shape: f32[8,128], index: 9, kind: output, shape index: {}]
  %s10 = sld [smem:[#allocation0]]
  $region66: #{_aenet_forward_pallas.1} parent=0
    _
  %s12 = ssub.s32 1, %s10
  %s13 = scalar_select 0, %s12, %s10
  $region1: #{_aenet_forward_pallas.1} parent=0
    #allocation2 [shape = 'u8[4096]{0}', space=vmem, size = 0x1000, scoped, tag = 'input window, operand 0, single buffered']
    #allocation3 [shape = 's32[1]{0}', space=sflag, size = 0x4, scoped, tag = 'scoped memory for _aenet_forward_pallas.1']
    #allocation4 [shape = 's32[1]{0}', space=sflag, size = 0x4, scoped, tag = 'scoped memory for _aenet_forward_pallas.1']
    #allocation5 [shape = 'u8[8192]{0}', space=vmem, size = 0x2000, scoped, tag = 'input window, operand 1, single buffered']
    #allocation6 [shape = 's32[1]{0}', space=sflag, size = 0x4, scoped, tag = 'scoped memory for _aenet_forward_pallas.1']
    #allocation7 [shape = 'u8[32768]{0}', space=vmem, size = 0x8000, scoped, tag = 'input window, operand 3, single buffered']
    #allocation8 [shape = 'u8[32768]{0}', space=vmem, size = 0x8000, scoped, tag = 'input window, operand 5, single buffered']
    #allocation9 [shape = 's32[1]{0}', space=sflag, size = 0x4, scoped, tag = 'scoped memory for _aenet_forward_pallas.1']
    #allocation10 [shape = 'u8[32768]{0}', space=vmem, size = 0x8000, scoped, tag = 'input window, operand 7, single buffered']
    #allocation11 [shape = 'u8[4096]{0}', space=vmem, size = 0x1000, scoped, tag = 'output window, operand 0, single buffered']
    %14 = vsyncpa [#allocation3], 0
    %15 = vsyncpa [#allocation6], 0
    %16 = vsyncpa [#allocation9], 0
    %17 = vsyncpa [#allocation4], 0
    // Predicated region
    $region2: #{_aenet_forward_pallas.1} parent=1 // pred_check
      _
    $region3: #{_aenet_forward_pallas.1} parent=1 // pred_check_branch
      %19 = sbr.rel (0) target = $region5
    $region4: #{_aenet_forward_pallas.1} parent=1 // pred_region
      %s21 = ssub.s32 128, 128
      %22 = vsyncadd [#allocation3], %s21
      %s24 = sshll.u32 [#allocation2], 4
      %s25 = int_to_ptr.vmem [resolvable:$true] %s24
      %27 = dma.hbm_to_vmem [thread:$0]  %s0, 128, %s25, [#allocation3]
    $region5: #{_aenet_forward_pallas.1} parent=1 // pred_fallthru
      _
    // Predicated region
    $region6: #{_aenet_forward_pallas.1} parent=1 // pred_check
      _
    $region7: #{_aenet_forward_pallas.1} parent=1 // pred_check_branch
      %29 = sbr.rel (0) target = $region9
    $region8: #{_aenet_forward_pallas.1} parent=1 // pred_region
      %s31 = ssub.s32 256, 256
      %32 = vsyncadd [#allocation6], %s31
      %s33 = sshll.u32 [#allocation5], 4
      %s34 = int_to_ptr.vmem [resolvable:$true] %s33
      %39 = dma.hbm_to_vmem [thread:$0]  %s1, 256, %s34, [#allocation6], 64, 64, 4
    $region9: #{_aenet_forward_pallas.1} parent=1 // pred_fallthru
      _
    // Predicated region
    $region10: #{_aenet_forward_pallas.1} parent=1 // pred_check
      _
    $region11: #{_aenet_forward_pallas.1} parent=1 // pred_check_branch
      %41 = sbr.rel (0) target = $region13
    $region12: #{_aenet_forward_pallas.1} parent=1 // pred_region
      _
    $region13: #{_aenet_forward_pallas.1} parent=1 // pred_fallthru
      _
    // Predicated region
    $region14: #{_aenet_forward_pallas.1} parent=1 // pred_check
      _
    $region15: #{_aenet_forward_pallas.1} parent=1 // pred_check_branch
      %43 = sbr.rel (0) target = $region17
    $region16: #{_aenet_forward_pallas.1} parent=1 // pred_region
      %s45 = ssub.s32 1024, 1024
      %46 = vsyncadd [#allocation6], %s45
      %s47 = sshll.u32 [#allocation7], 4
      %s48 = int_to_ptr.vmem [resolvable:$true] %s47
      %53 = dma.hbm_to_vmem [thread:$0]  %s3, 1024, %s48, [#allocation6], 64, 64, 4
    $region17: #{_aenet_forward_pallas.1} parent=1 // pred_fallthru
      _
    // Predicated region
    $region18: #{_aenet_forward_pallas.1} parent=1 // pred_check
      _
    $region19: #{_aenet_forward_pallas.1} parent=1 // pred_check_branch
      %55 = sbr.rel (0) target = $region21
    $region20: #{_aenet_forward_pallas.1} parent=1 // pred_region
      _
    $region21: #{_aenet_forward_pallas.1} parent=1 // pred_fallthru
      _
    // Predicated region
    $region22: #{_aenet_forward_pallas.1} parent=1 // pred_check
      _
    $region23: #{_aenet_forward_pallas.1} parent=1 // pred_check_branch
      %57 = sbr.rel (0) target = $region25
    $region24: #{_aenet_forward_pallas.1} parent=1 // pred_region
      %s59 = ssub.s32 1024, 1024
      %60 = vsyncadd [#allocation9], %s59
      %s61 = sshll.u32 [#allocation8], 4
      %s62 = int_to_ptr.vmem [resolvable:$true] %s61
      %67 = dma.hbm_to_vmem [thread:$0]  %s5, 1024, %s62, [#allocation9], 64, 64, 4
    $region25: #{_aenet_forward_pallas.1} parent=1 // pred_fallthru
      _
    // Predicated region
    $region26: #{_aenet_forward_pallas.1} parent=1 // pred_check
      _
    $region27: #{_aenet_forward_pallas.1} parent=1 // pred_check_branch
      %69 = sbr.rel (0) target = $region29
    $region28: #{_aenet_forward_pallas.1} parent=1 // pred_region
      _
    $region29: #{_aenet_forward_pallas.1} parent=1 // pred_fallthru
      _
    // Predicated region
    $region30: #{_aenet_forward_pallas.1} parent=1 // pred_check
      _
    $region31: #{_aenet_forward_pallas.1} parent=1 // pred_check_branch
      %71 = sbr.rel (0) target = $region33
    $region32: #{_aenet_forward_pallas.1} parent=1 // pred_region
      %s73 = ssub.s32 1024, 1024
      %74 = vsyncadd [#allocation9], %s73
      %s75 = sshll.u32 [#allocation10], 4
      %s76 = int_to_ptr.vmem [resolvable:$true] %s75
      %81 = dma.hbm_to_vmem [thread:$0]  %s7, 1024, %s76, [#allocation9], 64, 64, 4
    $region33: #{_aenet_forward_pallas.1} parent=1 // pred_fallthru
      _
    // Predicated region
    $region34: #{_aenet_forward_pallas.1} parent=1 // pred_check
      _
    $region35: #{_aenet_forward_pallas.1} parent=1 // pred_check_branch
      %83 = sbr.rel (0) target = $region37
    $region36: #{_aenet_forward_pallas.1} parent=1 // pred_region
      _
    $region37: #{_aenet_forward_pallas.1} parent=1 // pred_fallthru
      _
    // Predicated region
    $region38: #{_aenet_forward_pallas.1} parent=1 // pred_check
      _
    $region39: #{_aenet_forward_pallas.1} parent=1 // pred_check_branch
      %85 = sbr.rel (0) target = $region41
    $region40: #{_aenet_forward_pallas.1} parent=1 // pred_region
      %86 = dma.done [#allocation3], 128
    $region41: #{_aenet_forward_pallas.1} parent=1 // pred_fallthru
      _
    // Predicated region
    $region42: #{_aenet_forward_pallas.1} parent=1 // pred_check
      _
    $region43: #{_aenet_forward_pallas.1} parent=1 // pred_check_branch
      %88 = sbr.rel (0) target = $region45
    $region44: #{_aenet_forward_pallas.1} parent=1 // pred_region
      %89 = dma.done [#allocation6], 256
    $region45: #{_aenet_forward_pallas.1} parent=1 // pred_fallthru
      _
    // Predicated region
    $region46: #{_aenet_forward_pallas.1} parent=1 // pred_check
      _
    $region47: #{_aenet_forward_pallas.1} parent=1 // pred_check_branch
      %91 = sbr.rel (0) target = $region49
    $region48: #{_aenet_forward_pallas.1} parent=1 // pred_region
      %92 = dma.done [#allocation6], 1024
    $region49: #{_aenet_forward_pallas.1} parent=1 // pred_fallthru
      _
    // Predicated region
    $region50: #{_aenet_forward_pallas.1} parent=1 // pred_check
      _
    $region51: #{_aenet_forward_pallas.1} parent=1 // pred_check_branch
      %94 = sbr.rel (0) target = $region53
    $region52: #{_aenet_forward_pallas.1} parent=1 // pred_region
      %95 = dma.done [#allocation9], 1024
    $region53: #{_aenet_forward_pallas.1} parent=1 // pred_fallthru
      _
    // Predicated region
    $region54: #{_aenet_forward_pallas.1} parent=1 // pred_check
      _
    $region55: #{_aenet_forward_pallas.1} parent=1 // pred_check_branch
      %97 = sbr.rel (0) target = $region57
    $region56: #{_aenet_forward_pallas.1} parent=1 // pred_region
      %98 = dma.done [#allocation9], 1024
    $region57: #{_aenet_forward_pallas.1} parent=1 // pred_fallthru
      _
    %v100 = vld [vmem:[#allocation2] sm:$0xff]
    %v101 = vld [vmem:[%s2] sm:$0x1]
    %v102 = vunpack.c.l.bf16 %v101
    %v103 = vpack.c.bf16 %v100, %v100
    %v104 = vld [vmem:[#allocation5] sm:$0xf]
    %v105 = vld [vmem:[#allocation5 + $0x4] sm:$0xf]
    %v106 = vld [vmem:[#allocation5 + $0x8] sm:$0xf]
    %v107 = vld [vmem:[#allocation5 + $0xc] sm:$0xf]
    %v108 = vlaneseq
    %v109 = vshrl.u32 %v108, 7
    %v110 = vsub.s32 0, %v109
    %v111 = vrot.slane %v102, %v110
    %v116 = vunpack.c.l.b16 %v104
    %v117 = vunpack.c.l.b16 %v105
    %v118 = vunpack.c.l.b16 %v106
    %v119 = vunpack.c.l.b16 %v107
    %v120 = vpack.c.b16 %v117, %v116
    %v121 = vpack.c.b16 %v119, %v118
    %vm124 = vcmask 261120
    %v126 = vsel %vm124, %v103, 0
    %128 = vmatprep.subr.bf16.mxu0 0
    %129 = vmatpush1.bf16.msra.mxu0 0
    %130 = vmatprep.subr.bf16.mxu0 0
    %131 = vmatpush1.bf16.msra.mxu0 0
    %132 = vmatprep.subr.bf16.mxu0 0
    %133 = vmatpush1.bf16.msra.mxu0 0
    %134 = vmatprep.subr.bf16.mxu0 0
    %135 = vmatpush1.bf16.msra.mxu0 0
    %136 = vmatprep.subr.bf16.mxu0 0
    %137 = vmatpush1.bf16.msra.mxu0 0
    %138 = vmatprep.subr.bf16.mxu0 0
    %139 = vmatpush1.bf16.msra.mxu0 0
    %140 = vmatprep.subr.bf16.mxu0 0
    %141 = vmatpush1.bf16.msra.mxu0 %v121
    %142 = vmatprep.subr.bf16.mxu0 0
    %143 = vmatpush1.bf16.msra.mxu0 %v120
    %144 = vmatprep.subr.bf16.mxu0 0
    %145 = vmatpush2.bf16.msra.mxu0 0
    %146 = vmatprep.subr.bf16.mxu0 0
    %147 = vmatpush2.bf16.msra.mxu0 0
    %148 = vmatprep.subr.bf16.mxu0 0
    %149 = vmatpush2.bf16.msra.mxu0 0
    %150 = vmatprep.subr.bf16.mxu0 0
    %151 = vmatpush2.bf16.msra.mxu0 0
    %152 = vmatprep.subr.bf16.mxu0 0
    %153 = vmatpush2.bf16.msra.mxu0 0
    %154 = vmatprep.subr.bf16.mxu0 0
    %155 = vmatpush2.bf16.msra.mxu0 0
    %156 = vmatprep.subr.bf16.mxu0 0
    %157 = vmatpush2.bf16.msra.mxu0 0
    %158 = vmatprep.subr.bf16.mxu0 0
    %159 = vmatpush2.bf16.msra.mxu0 0
    %160 = vmatprep.mubr.bf16.mxu0 0
    %161 = vmatmul.mubr.bf16.gmra.mxu0 %v126
    %v162 = vpop.f32.mrf.mxu0
    %v163 = vadd.f32 %v111, %v162
    %v164 = vpop.f32.mrf.mxu0
    %v165 = vpop.f32.mrf.mxu0
    %v166 = vpop.f32.mrf.mxu0
    %167 = vdwg.mxu0
    %v168 = vtanh.pop %v163
    %v169 = vld [vmem:[%s4] sm:$0x1]
    %v170 = vunpack.c.l.bf16 %v169
    %v171 = vpack.c.bf16 %v168, %v168
    %v172 = vld [vmem:[#allocation7] sm:$0xf]
    %v173 = vld [vmem:[#allocation7 + $0x4] sm:$0xf]
    %v174 = vld [vmem:[#allocation7 + $0x8] sm:$0xf]
    %v175 = vld [vmem:[#allocation7 + $0xc] sm:$0xf]
    %v176 = vld [vmem:[#allocation7 + $0x10] sm:$0xf]
    %v177 = vld [vmem:[#allocation7 + $0x14] sm:$0xf]
    %v178 = vld [vmem:[#allocation7 + $0x18] sm:$0xf]
    %v179 = vld [vmem:[#allocation7 + $0x1c] sm:$0xf]
    %v180 = vld [vmem:[#allocation7 + $0x20] sm:$0xf]
    %v181 = vld [vmem:[#allocation7 + $0x24] sm:$0xf]
    %v182 = vld [vmem:[#allocation7 + $0x28] sm:$0xf]
    %v183 = vld [vmem:[#allocation7 + $0x2c] sm:$0xf]
    %v184 = vld [vmem:[#allocation7 + $0x30] sm:$0xf]
    %v185 = vld [vmem:[#allocation7 + $0x34] sm:$0xf]
    %v186 = vld [vmem:[#allocation7 + $0x38] sm:$0xf]
    %v187 = vld [vmem:[#allocation7 + $0x3c] sm:$0xf]
    %v188 = vlaneseq
    %v189 = vshrl.u32 %v188, 7
    %v190 = vsub.s32 0, %v189
    %v191 = vrot.slane %v170, %v190
    %v208 = vunpack.c.l.b16 %v172
    %v209 = vunpack.c.l.b16 %v173
    %v210 = vunpack.c.l.b16 %v174
    %v211 = vunpack.c.l.b16 %v175
    %v212 = vunpack.c.l.b16 %v176
    %v213 = vunpack.c.l.b16 %v177
    %v214 = vunpack.c.l.b16 %v178
    %v215 = vunpack.c.l.b16 %v179
    %v216 = vunpack.c.l.b16 %v180
    %v217 = vunpack.c.l.b16 %v181
    %v218 = vunpack.c.l.b16 %v182
    %v219 = vunpack.c.l.b16 %v183
    %v220 = vunpack.c.l.b16 %v184
    %v221 = vunpack.c.l.b16 %v185
    %v222 = vunpack.c.l.b16 %v186
    %v223 = vunpack.c.l.b16 %v187
    %v224 = vpack.c.b16 %v209, %v208
    %v225 = vpack.c.b16 %v211, %v210
    %v226 = vpack.c.b16 %v213, %v212
    %v227 = vpack.c.b16 %v215, %v214
    %v228 = vpack.c.b16 %v217, %v216
    %v229 = vpack.c.b16 %v219, %v218
    %v230 = vpack.c.b16 %v221, %v220
    %v231 = vpack.c.b16 %v223, %v222
    %240 = vmatprep.subr.bf16.mxu0 0
    %241 = vmatpush1.bf16.msra.mxu0 %v231
    %242 = vmatprep.subr.bf16.mxu0 0
    %243 = vmatpush1.bf16.msra.mxu0 %v230
    %244 = vmatprep.subr.bf16.mxu0 0
    %245 = vmatpush1.bf16.msra.mxu0 %v229
    %246 = vmatprep.subr.bf16.mxu0 0
    %247 = vmatpush1.bf16.msra.mxu0 %v228
    %248 = vmatprep.subr.bf16.mxu0 0
    %249 = vmatpush1.bf16.msra.mxu0 %v227
    %250 = vmatprep.subr.bf16.mxu0 0
    %251 = vmatpush1.bf16.msra.mxu0 %v226
    %252 = vmatprep.subr.bf16.mxu0 0
    %253 = vmatpush1.bf16.msra.mxu0 %v225
    %254 = vmatprep.subr.bf16.mxu0 0
    %255 = vmatpush1.bf16.msra.mxu0 %v224
    %256 = vmatprep.subr.bf16.mxu0 0
    %257 = vmatpush2.bf16.msra.mxu0 0
    %258 = vmatprep.subr.bf16.mxu0 0
    %259 = vmatpush2.bf16.msra.mxu0 0
    %260 = vmatprep.subr.bf16.mxu0 0
    %261 = vmatpush2.bf16.msra.mxu0 0
    %262 = vmatprep.subr.bf16.mxu0 0
    %263 = vmatpush2.bf16.msra.mxu0 0
    %264 = vmatprep.subr.bf16.mxu0 0
    %265 = vmatpush2.bf16.msra.mxu0 0
    %266 = vmatprep.subr.bf16.mxu0 0
    %267 = vmatpush2.bf16.msra.mxu0 0
    %268 = vmatprep.subr.bf16.mxu0 0
    %269 = vmatpush2.bf16.msra.mxu0 0
    %270 = vmatprep.subr.bf16.mxu0 0
    %271 = vmatpush2.bf16.msra.mxu0 0
    %272 = vmatprep.mubr.bf16.mxu0 0
    %273 = vmatmul.mubr.bf16.gmra.mxu0 %v171
    %v274 = vpop.f32.mrf.mxu0
    %v275 = vadd.f32 %v191, %v274
    %v276 = vpop.f32.mrf.mxu0
    %v277 = vpop.f32.mrf.mxu0
    %v278 = vpop.f32.mrf.mxu0
    %279 = vdwg.mxu0
    %v280 = vmul.f32 %v275, 0.5
    %v281 = vtanh.pop %v280
    %v282 = vadd.f32 %v281, 1.0
    %v283 = vmul.f32 %v282, 0.5
    %v284 = vld [vmem:[%s6] sm:$0x1]
    %v285 = vunpack.c.l.bf16 %v284
    %v286 = vpack.c.bf16 %v283, %v283
    %v287 = vld [vmem:[#allocation8] sm:$0xf]
    %v288 = vld [vmem:[#allocation8 + $0x4] sm:$0xf]
    %v289 = vld [vmem:[#allocation8 + $0x8] sm:$0xf]
    %v290 = vld [vmem:[#allocation8 + $0xc] sm:$0xf]
    %v291 = vld [vmem:[#allocation8 + $0x10] sm:$0xf]
    %v292 = vld [vmem:[#allocation8 + $0x14] sm:$0xf]
    %v293 = vld [vmem:[#allocation8 + $0x18] sm:$0xf]
    %v294 = vld [vmem:[#allocation8 + $0x1c] sm:$0xf]
    %v295 = vld [vmem:[#allocation8 + $0x20] sm:$0xf]
    %v296 = vld [vmem:[#allocation8 + $0x24] sm:$0xf]
    %v297 = vld [vmem:[#allocation8 + $0x28] sm:$0xf]
    %v298 = vld [vmem:[#allocation8 + $0x2c] sm:$0xf]
    %v299 = vld [vmem:[#allocation8 + $0x30] sm:$0xf]
    %v300 = vld [vmem:[#allocation8 + $0x34] sm:$0xf]
    %v301 = vld [vmem:[#allocation8 + $0x38] sm:$0xf]
    %v302 = vld [vmem:[#allocation8 + $0x3c] sm:$0xf]
    %v303 = vlaneseq
    %v304 = vshrl.u32 %v303, 7
    %v305 = vsub.s32 0, %v304
    %v306 = vrot.slane %v285, %v305
    %v323 = vunpack.c.l.b16 %v287
    %v324 = vunpack.c.l.b16 %v288
    %v325 = vunpack.c.l.b16 %v289
    %v326 = vunpack.c.l.b16 %v290
    %v327 = vunpack.c.l.b16 %v291
    %v328 = vunpack.c.l.b16 %v292
    %v329 = vunpack.c.l.b16 %v293
    %v330 = vunpack.c.l.b16 %v294
    %v331 = vunpack.c.l.b16 %v295
    %v332 = vunpack.c.l.b16 %v296
    %v333 = vunpack.c.l.b16 %v297
    %v334 = vunpack.c.l.b16 %v298
    %v335 = vunpack.c.l.b16 %v299
    %v336 = vunpack.c.l.b16 %v300
    %v337 = vunpack.c.l.b16 %v301
    %v338 = vunpack.c.l.b16 %v302
    %v339 = vpack.c.b16 %v324, %v323
    %v340 = vpack.c.b16 %v326, %v325
    %v341 = vpack.c.b16 %v328, %v327
    %v342 = vpack.c.b16 %v330, %v329
    %v343 = vpack.c.b16 %v332, %v331
    %v344 = vpack.c.b16 %v334, %v333
    %v345 = vpack.c.b16 %v336, %v335
    %v346 = vpack.c.b16 %v338, %v337
    %355 = vmatprep.subr.bf16.mxu0 0
    %356 = vmatpush1.bf16.msra.mxu0 %v346
    %357 = vmatprep.subr.bf16.mxu0 0
    %358 = vmatpush1.bf16.msra.mxu0 %v345
    %359 = vmatprep.subr.bf16.mxu0 0
    %360 = vmatpush1.bf16.msra.mxu0 %v344
    %361 = vmatprep.subr.bf16.mxu0 0
    %362 = vmatpush1.bf16.msra.mxu0 %v343
    %363 = vmatprep.subr.bf16.mxu0 0
    %364 = vmatpush1.bf16.msra.mxu0 %v342
    %365 = vmatprep.subr.bf16.mxu0 0
    %366 = vmatpush1.bf16.msra.mxu0 %v341
    %367 = vmatprep.subr.bf16.mxu0 0
    %368 = vmatpush1.bf16.msra.mxu0 %v340
    %369 = vmatprep.subr.bf16.mxu0 0
    %370 = vmatpush1.bf16.msra.mxu0 %v339
    %371 = vmatprep.subr.bf16.mxu0 0
    %372 = vmatpush2.bf16.msra.mxu0 0
    %373 = vmatprep.subr.bf16.mxu0 0
    %374 = vmatpush2.bf16.msra.mxu0 0
    %375 = vmatprep.subr.bf16.mxu0 0
    %376 = vmatpush2.bf16.msra.mxu0 0
    %377 = vmatprep.subr.bf16.mxu0 0
    %378 = vmatpush2.bf16.msra.mxu0 0
    %379 = vmatprep.subr.bf16.mxu0 0
    %380 = vmatpush2.bf16.msra.mxu0 0
    %381 = vmatprep.subr.bf16.mxu0 0
    %382 = vmatpush2.bf16.msra.mxu0 0
    %383 = vmatprep.subr.bf16.mxu0 0
    %384 = vmatpush2.bf16.msra.mxu0 0
    %385 = vmatprep.subr.bf16.mxu0 0
    %386 = vmatpush2.bf16.msra.mxu0 0
    %387 = vmatprep.mubr.bf16.mxu0 0
    %388 = vmatmul.mubr.bf16.gmra.mxu0 %v286
    %v389 = vpop.f32.mrf.mxu0
    %v390 = vadd.f32 %v306, %v389
    %v391 = vpop.f32.mrf.mxu0
    %v392 = vpop.f32.mrf.mxu0
    %v393 = vpop.f32.mrf.mxu0
    %394 = vdwg.mxu0
    %v395 = vtanh.pop %v390
    %v396 = vld [vmem:[%s8] sm:$0x1]
    %v397 = vunpack.c.l.bf16 %v396
    %v398 = vpack.c.bf16 %v395, %v395
    %v399 = vld [vmem:[#allocation10] sm:$0xf]
    %v400 = vld [vmem:[#allocation10 + $0x4] sm:$0xf]
    %v401 = vld [vmem:[#allocation10 + $0x8] sm:$0xf]
    %v402 = vld [vmem:[#allocation10 + $0xc] sm:$0xf]
    %v403 = vld [vmem:[#allocation10 + $0x10] sm:$0xf]
    %v404 = vld [vmem:[#allocation10 + $0x14] sm:$0xf]
    %v405 = vld [vmem:[#allocation10 + $0x18] sm:$0xf]
    %v406 = vld [vmem:[#allocation10 + $0x1c] sm:$0xf]
    %v407 = vld [vmem:[#allocation10 + $0x20] sm:$0xf]
    %v408 = vld [vmem:[#allocation10 + $0x24] sm:$0xf]
    %v409 = vld [vmem:[#allocation10 + $0x28] sm:$0xf]
    %v410 = vld [vmem:[#allocation10 + $0x2c] sm:$0xf]
    %v411 = vld [vmem:[#allocation10 + $0x30] sm:$0xf]
    %v412 = vld [vmem:[#allocation10 + $0x34] sm:$0xf]
    %v413 = vld [vmem:[#allocation10 + $0x38] sm:$0xf]
    %v414 = vld [vmem:[#allocation10 + $0x3c] sm:$0xf]
    %v415 = vlaneseq
    %v416 = vshrl.u32 %v415, 7
    %v417 = vsub.s32 0, %v416
    %v418 = vrot.slane %v397, %v417
    %v435 = vunpack.c.l.b16 %v399
    %v436 = vunpack.c.l.b16 %v400
    %v437 = vunpack.c.l.b16 %v401
    %v438 = vunpack.c.l.b16 %v402
    %v439 = vunpack.c.l.b16 %v403
    %v440 = vunpack.c.l.b16 %v404
    %v441 = vunpack.c.l.b16 %v405
    %v442 = vunpack.c.l.b16 %v406
    %v443 = vunpack.c.l.b16 %v407
    %v444 = vunpack.c.l.b16 %v408
    %v445 = vunpack.c.l.b16 %v409
    %v446 = vunpack.c.l.b16 %v410
    %v447 = vunpack.c.l.b16 %v411
    %v448 = vunpack.c.l.b16 %v412
    %v449 = vunpack.c.l.b16 %v413
    %v450 = vunpack.c.l.b16 %v414
    %v451 = vpack.c.b16 %v436, %v435
    %v452 = vpack.c.b16 %v438, %v437
    %v453 = vpack.c.b16 %v440, %v439
    %v454 = vpack.c.b16 %v442, %v441
    %v455 = vpack.c.b16 %v444, %v443
    %v456 = vpack.c.b16 %v446, %v445
    %v457 = vpack.c.b16 %v448, %v447
    %v458 = vpack.c.b16 %v450, %v449
    %467 = vmatprep.subr.bf16.mxu0 0
    %468 = vmatpush1.bf16.msra.mxu0 %v458
    %469 = vmatprep.subr.bf16.mxu0 0
    %470 = vmatpush1.bf16.msra.mxu0 %v457
    %471 = vmatprep.subr.bf16.mxu0 0
    %472 = vmatpush1.bf16.msra.mxu0 %v456
    %473 = vmatprep.subr.bf16.mxu0 0
    %474 = vmatpush1.bf16.msra.mxu0 %v455
    %475 = vmatprep.subr.bf16.mxu0 0
    %476 = vmatpush1.bf16.msra.mxu0 %v454
    %477 = vmatprep.subr.bf16.mxu0 0
    %478 = vmatpush1.bf16.msra.mxu0 %v453
    %479 = vmatprep.subr.bf16.mxu0 0
    %480 = vmatpush1.bf16.msra.mxu0 %v452
    %481 = vmatprep.subr.bf16.mxu0 0
    %482 = vmatpush1.bf16.msra.mxu0 %v451
    %483 = vmatprep.subr.bf16.mxu0 0
    %484 = vmatpush2.bf16.msra.mxu0 0
    %485 = vmatprep.subr.bf16.mxu0 0
    %486 = vmatpush2.bf16.msra.mxu0 0
    %487 = vmatprep.subr.bf16.mxu0 0
    %488 = vmatpush2.bf16.msra.mxu0 0
    %489 = vmatprep.subr.bf16.mxu0 0
    %490 = vmatpush2.bf16.msra.mxu0 0
    %491 = vmatprep.subr.bf16.mxu0 0
    %492 = vmatpush2.bf16.msra.mxu0 0
    %493 = vmatprep.subr.bf16.mxu0 0
    %494 = vmatpush2.bf16.msra.mxu0 0
    %495 = vmatprep.subr.bf16.mxu0 0
    %496 = vmatpush2.bf16.msra.mxu0 0
    %497 = vmatprep.subr.bf16.mxu0 0
    %498 = vmatpush2.bf16.msra.mxu0 0
    %499 = vmatprep.mubr.bf16.mxu0 0
    %500 = vmatmul.mubr.bf16.gmra.mxu0 %v398
    %v501 = vpop.f32.mrf.mxu0
    %v502 = vadd.f32 %v418, %v501
    %v503 = vpop.f32.mrf.mxu0
    %v504 = vpop.f32.mrf.mxu0
    %v505 = vpop.f32.mrf.mxu0
    %506 = vdwg.mxu0
    %507 = vst [vmem:[#allocation11] sm:$0xff] %v502
    // Predicated region
    $region58: #{_aenet_forward_pallas.1} parent=1 // pred_check
      _
    $region59: #{_aenet_forward_pallas.1} parent=1 // pred_check_branch
      %509 = sbr.rel (0) target = $region61
    $region60: #{_aenet_forward_pallas.1} parent=1 // pred_region
      %s511 = ssub.s32 128, 128
      %512 = vsyncadd [#allocation4], %s511
      %s514 = sshll.u32 [#allocation11], 4
      %s515 = int_to_ptr.vmem [resolvable:$true] %s514
      %517 = dma.vmem_to_hbm [thread:$0]  %s515, 128, %s9, [#allocation4]
    $region61: #{_aenet_forward_pallas.1} parent=1 // pred_fallthru
      _
    // Predicated region
    $region62: #{_aenet_forward_pallas.1} parent=1 // pred_check
      _
    $region63: #{_aenet_forward_pallas.1} parent=1 // pred_check_branch
      %519 = sbr.rel (0) target = $region65
    $region64: #{_aenet_forward_pallas.1} parent=1 // pred_region
      %520 = dma.done [#allocation4], 128
    $region65: #{_aenet_forward_pallas.1} parent=1 // pred_fallthru
      _
    %521 = vsyncpa [#allocation3], 1
    %522 = vsyncpa [#allocation6], 1
    %523 = vsyncpa [#allocation9], 1
    %524 = vsyncpa [#allocation4], 1

</llo_original>
